<compile_context>
chip_gen: v7x
topology: tpu7x:2x2x1
jax: 0.10.0
libtpu: 0.0.40
codegen_flags: <defaults>
</compile_context>

<pallas_src>
import jax
import jax.numpy as jnp
from jax.experimental import pallas as pl
from jax.experimental.pallas import tpu as pltpu


def _make_elmo_kernel(num_layers_p1):
    """Build the kernel for a static number of layers (L+1 separate refs)."""

    def kernel(mix_ref, *refs):
        # mix_ref:            (L1, TILE_S, 1) f32  -- softmax(weights, axis=seq) * gamma
        # refs[:L1]:          L1 x (TILE_S, H)     -- per-layer states (batch dim squeezed)
        # refs[L1]:           (TILE_S, H)          -- output
        state_refs = refs[:num_layers_p1]
        out_ref = refs[num_layers_p1]
        # Statically unrolled VPU multiply-accumulate over the tiny layer axis.
        # Single f32 accumulator tile live; works for bf16 state inputs too.
        acc = state_refs[0][...].astype(jnp.float32) * mix_ref[0]
        for l in range(1, num_layers_p1):
            acc = acc + state_refs[l][...].astype(jnp.float32) * mix_ref[l]
        out_ref[...] = acc.astype(out_ref.dtype)

    return kernel


def _vmem_budgets():
    """(per-step block budget, scoped vmem cap) sized per TPU generation."""
    try:
        info = pltpu.get_tpu_info()
        cap = int(getattr(info, "vmem_capacity_bytes", 64 << 20))
    except Exception:  # conservative default if the query is unavailable
        cap = 64 << 20
    if cap >= (100 << 20):          # v5e / v6e: 128 MiB VMEM per TensorCore
        return 16 << 20, 64 << 20
    return 8 << 20, 32 << 20        # v7x: 64 MiB VMEM per TensorCore


def _pick_tile_s(S, B, block_bytes_fn, block_budget):
    """Largest multiple-of-8 divisor of S within budget; >=2 tiles if B == 1."""
    if S % 8 != 0:
        # Full-extent fallback: block equals the array dims, always legal.
        return S
    candidates = [t for t in range(8, S + 1, 8) if S % t == 0]
    within = [t for t in candidates if block_bytes_fn(t) <= block_budget]
    if not within:
        within = [candidates[0]]    # best effort: smallest aligned tile
    tile = max(within)
    if B == 1 and tile == S:
        # Give v7x's second TensorCore something to do for single-batch shapes.
        smaller = [t for t in within if t < S]
        if smaller:
            tile = max(smaller)
    return tile


def elmo_forward(weights, gamma, state_list, *, tile_s=None):
    """weights: (L+1, S); gamma: (S, 1); state_list: list of (B, S, H) arrays."""
    num_layers_p1 = len(state_list)
    B, S, H = state_list[0].shape
    state_dtype = state_list[0].dtype
    assert weights.shape == (num_layers_p1, S)
    assert gamma.shape == (S, 1)
    # NOTE: for production use keep H a multiple of 128 (lane-dense stores);
    # smaller H still compiles because the block spans the full H extent.

    # Hoist softmax (over the sequence axis, dim=1 of the PyTorch module) and
    # fold gamma into one per-(layer, position) scale, shaped (L1, S, 1) so it
    # broadcasts over H inside the kernel with no transpose/relayout.
    mix = jax.nn.softmax(weights.astype(jnp.float32), axis=1)   # (L1, S)
    mix = (mix * gamma.astype(jnp.float32).T)[:, :, None]       # (L1, S, 1)

    block_budget, vmem_cap = _vmem_budgets()
    itemsize = jnp.dtype(state_dtype).itemsize

    def block_bytes(t):
        state_blocks = num_layers_p1 * t * H * itemsize
        out_block = t * H * itemsize
        mix_block = num_layers_p1 * t * 4
        return state_blocks + out_block + mix_block

    if tile_s is None:
        tile_s = _pick_tile_s(S, B, block_bytes, block_budget)
    assert S % tile_s == 0, "tile_s must divide the sequence length"

    n_seq_tiles = S // tile_s
    # Grid ordered (seq_tile, batch): the mix block index is constant along the
    # inner (batch) axis, so Pallas skips its re-fetch on inner iterations.
    grid = (n_seq_tiles, B)

    acc_temp = tile_s * H * 4  # f32 accumulator temporary
    vmem_bytes = int(
        min(max(2 * block_bytes(tile_s) + acc_temp + (4 << 20), 16 << 20),
            vmem_cap))

    kernel = _make_elmo_kernel(num_layers_p1)

    state_spec = pl.BlockSpec((None, tile_s, H), lambda s, b: (b, s, 0))
    in_specs = [pl.BlockSpec((num_layers_p1, tile_s, 1), lambda s, b: (0, s, 0))]
    in_specs += [state_spec] * num_layers_p1

    out = pl.pallas_call(
        kernel,
        out_shape=jax.ShapeDtypeStruct((B, S, H), state_dtype),
        grid_spec=pltpu.PrefetchScalarGridSpec(
            num_scalar_prefetch=0,
            grid=grid,
            in_specs=in_specs,
            out_specs=pl.BlockSpec((None, tile_s, H), lambda s, b: (b, s, 0)),
        ),
        compiler_params=pltpu.CompilerParams(
            dimension_semantics=("parallel", "parallel"),
            vmem_limit_bytes=vmem_bytes,
        ),
    )(mix, *state_list)
    return out


def elmo_reference(weights, gamma, state_list):
    nw = jax.nn.softmax(weights, axis=1)                      # (L+1, S)
    all_state = jnp.stack(state_list, axis=2)                 # (B, S, L+1, H)
    nw_t = jnp.transpose(nw, (1, 0))[:, None, :]              # (S, 1, L+1)
    weighted = jnp.squeeze(jnp.matmul(nw_t, all_state), axis=2)
    return gamma * weighted


if __name__ == "__main__":
    # Small shapes consistent with the module's forward.
    batch, num_layers, max_len, hidden = 2, 2, 8, 32
    L1 = num_layers + 1

    key = jax.random.PRNGKey(0)
    k_w, k_g, k_s = jax.random.split(key, 3)

    # Deterministic parameter init (torch.randn equivalents).
    weights = jax.random.normal(k_w, (L1, max_len), dtype=jnp.float32)
    gamma = jax.random.normal(k_g, (max_len, 1), dtype=jnp.float32)

    # state_list: L+1 tensors of shape (batch, max_len, hidden).
    state_keys = jax.random.split(k_s, L1)
    state_list = [
        jax.random.normal(state_keys[i], (batch, max_len, hidden), dtype=jnp.float32)
        for i in range(L1)
    ]

    out = elmo_forward(weights, gamma, state_list)
    out = jax.block_until_ready(out)

    ref = elmo_reference(weights, gamma, state_list)
    assert out.shape == (batch, max_len, hidden)
    assert jnp.allclose(out, ref, atol=1e-5, rtol=1e-5), "mismatch vs reference"

    print("KERNEL_OK")
</pallas_src>

<mosaic_0001>
module attributes {stable_mosaic.version = 11 : i64} {
  func.func @kernel(%arg0: i32, %arg1: i32, %arg2: memref<3x8x1xf32, #tpu.memory_space<vmem>>, %arg3: memref<1x8x32xf32, #tpu.memory_space<vmem>>, %arg4: memref<1x8x32xf32, #tpu.memory_space<vmem>>, %arg5: memref<1x8x32xf32, #tpu.memory_space<vmem>>, %arg6: memref<1x8x32xf32, #tpu.memory_space<vmem>>) attributes {dimension_semantics = [#tpu.dimension_semantics<parallel>, #tpu.dimension_semantics<parallel>], iteration_bounds = array<i64: 1, 2>, scalar_prefetch = 0 : i64, scratch_operands = 0 : i64, tpu.core_type = #tpu.core_type<tc>, window_params = [{transform_indices = @transform_0, window_bounds = array<i64: 3, 8, 1>}, {transform_indices = @transform_1, window_bounds = array<i64: 1, 8, 32>}, {transform_indices = @transform_2, window_bounds = array<i64: 1, 8, 32>}, {transform_indices = @transform_3, window_bounds = array<i64: 1, 8, 32>}, {transform_indices = @transform_4, window_bounds = array<i64: 1, 8, 32>}]} {
    %c0 = arith.constant 0 : index
    %c0_0 = arith.constant 0 : index
    %c0_1 = arith.constant 0 : index
    %0 = vector.load %arg3[%c0, %c0_0, %c0_1] : memref<1x8x32xf32, #tpu.memory_space<vmem>>, vector<1x8x32xf32>
    %1 = vector.shape_cast %0 : vector<1x8x32xf32> to vector<8x32xf32>
    %c0_2 = arith.constant 0 : index
    %c0_3 = arith.constant 0 : index
    %c0_4 = arith.constant 0 : index
    %2 = vector.load %arg2[%c0_2, %c0_3, %c0_4] : memref<3x8x1xf32, #tpu.memory_space<vmem>>, vector<1x8x1xf32>
    %3 = vector.shape_cast %2 : vector<1x8x1xf32> to vector<8x1xf32>
    %4 = vector.broadcast %3 : vector<8x1xf32> to vector<8x32xf32>
    %5 = arith.mulf %1, %4 : vector<8x32xf32>
    %c0_5 = arith.constant 0 : index
    %c0_6 = arith.constant 0 : index
    %c0_7 = arith.constant 0 : index
    %6 = vector.load %arg4[%c0_5, %c0_6, %c0_7] : memref<1x8x32xf32, #tpu.memory_space<vmem>>, vector<1x8x32xf32>
    %7 = vector.shape_cast %6 : vector<1x8x32xf32> to vector<8x32xf32>
    %c1 = arith.constant 1 : index
    %c0_8 = arith.constant 0 : index
    %c0_9 = arith.constant 0 : index
    %8 = vector.load %arg2[%c1, %c0_8, %c0_9] : memref<3x8x1xf32, #tpu.memory_space<vmem>>, vector<1x8x1xf32>
    %9 = vector.shape_cast %8 : vector<1x8x1xf32> to vector<8x1xf32>
    %10 = vector.broadcast %9 : vector<8x1xf32> to vector<8x32xf32>
    %11 = arith.mulf %7, %10 : vector<8x32xf32>
    %12 = arith.addf %5, %11 : vector<8x32xf32>
    %c0_10 = arith.constant 0 : index
    %c0_11 = arith.constant 0 : index
    %c0_12 = arith.constant 0 : index
    %13 = vector.load %arg5[%c0_10, %c0_11, %c0_12] : memref<1x8x32xf32, #tpu.memory_space<vmem>>, vector<1x8x32xf32>
    %14 = vector.shape_cast %13 : vector<1x8x32xf32> to vector<8x32xf32>
    %c2 = arith.constant 2 : index
    %c0_13 = arith.constant 0 : index
    %c0_14 = arith.constant 0 : index
    %15 = vector.load %arg2[%c2, %c0_13, %c0_14] : memref<3x8x1xf32, #tpu.memory_space<vmem>>, vector<1x8x1xf32>
    %16 = vector.shape_cast %15 : vector<1x8x1xf32> to vector<8x1xf32>
    %17 = vector.broadcast %16 : vector<8x1xf32> to vector<8x32xf32>
    %18 = arith.mulf %14, %17 : vector<8x32xf32>
    %19 = arith.addf %12, %18 : vector<8x32xf32>
    %c0_15 = arith.constant 0 : index
    %c0_16 = arith.constant 0 : index
    %c0_17 = arith.constant 0 : index
    %20 = vector.load %arg6[%c0_15, %c0_16, %c0_17] : memref<1x8x32xf32, #tpu.memory_space<vmem>>, vector<1x8x32xf32>
    %21 = vector.shape_cast %20 : vector<1x8x32xf32> to vector<8x32xf32>
    %22 = vector.shape_cast %19 : vector<8x32xf32> to vector<1x8x32xf32>
    tpu.vector_store %arg6[%c0_15, %c0_16, %c0_17], %22 {strides = array<i32>} : memref<1x8x32xf32, #tpu.memory_space<vmem>>, vector<1x8x32xf32>,
    return
  }
  func.func @transform_0(%arg0: i32, %arg1: i32) -> (i32, i32, i32) {
    %c0_i32 = arith.constant 0 : i32
    %c0_i32_0 = arith.constant 0 : i32
    %c0_i32_1 = arith.constant 0 : i32
    return %c0_i32, %arg0, %c0_i32_0 : i32, i32, i32
  }
  func.func @transform_1(%arg0: i32, %arg1: i32) -> (i32, i32, i32) {
    %c0_i32 = arith.constant 0 : i32
    %c0_i32_0 = arith.constant 0 : i32
    return %arg1, %arg0, %c0_i32 : i32, i32, i32
  }
  func.func @transform_2(%arg0: i32, %arg1: i32) -> (i32, i32, i32) {
    %c0_i32 = arith.constant 0 : i32
    %c0_i32_0 = arith.constant 0 : i32
    return %arg1, %arg0, %c0_i32 : i32, i32, i32
  }
  func.func @transform_3(%arg0: i32, %arg1: i32) -> (i32, i32, i32) {
    %c0_i32 = arith.constant 0 : i32
    %c0_i32_0 = arith.constant 0 : i32
    return %arg1, %arg0, %c0_i32 : i32, i32, i32
  }
  func.func @transform_4(%arg0: i32, %arg1: i32) -> (i32, i32, i32) {
    %c0_i32 = arith.constant 0 : i32
    %c0_i32_0 = arith.constant 0 : i32
    return %arg1, %arg0, %c0_i32 : i32, i32, i32
  }
}

</mosaic_0001>

<llo_original>
// kernel: tpu_custom_call.1
$region0: #{tpu_custom_call.1}
  #allocation0 [shape = 'u32[]', space=smem, size = 0x4, offset = 0x4, fixed_abs, tag = 'smem constant byte address 0x4 - core index']
  #allocation1 [shape = 'u32[144,128]{1,0:T(1,128)}', space=vmem, size = 0x12000, scoped, tag = 'internal scratch']
  %s0 = inlined_call_operand.vmem [shape: f32[3,8,1], index: 0, kind: input, shape index: {}]
  %s1 = inlined_call_operand.vmem [shape: f32[2,8,32], index: 1, kind: input, shape index: {}]
  %s2 = inlined_call_operand.vmem [shape: f32[2,8,32], index: 2, kind: input, shape index: {}]
  %s3 = inlined_call_operand.hbm [shape: f32[2,8,32], index: 3, kind: input, shape index: {}]
  %s4 = inlined_call_operand.hbm [shape: f32[2,8,32], index: 4, kind: output, shape index: {}]
  %s5 = sld [smem:[#allocation0]]
  $region53: #{tpu_custom_call.1} parent=0
    _
  %s7 = ssub.s32 1, %s5
  %s8 = scalar_select 0, %s7, %s5
  $region1: #{tpu_custom_call.1} parent=0
    #allocation2 [shape = 'u8[8192]{0}', space=vmem, size = 0x2000, scoped, tag = 'input window, operand 3']
    #allocation3 [shape = 's32[2]{0}', space=sflag, size = 0x8, scoped, tag = 'scoped memory for tpu_custom_call.1']
    #allocation4 [shape = 's32[2]{0}', space=sflag, size = 0x8, scoped, tag = 'scoped memory for tpu_custom_call.1']
    #allocation5 [shape = 'u8[8192]{0}', space=vmem, size = 0x2000, scoped, tag = 'output window, operand 0']
    %9 = vsyncpa [#allocation3], 0
    %s10 = scalar_lea.sflag [#allocation3], 1
    %11 = vsyncpa %s10, 0
    %12 = vsyncpa [#allocation4], 0
    %s13 = scalar_lea.sflag [#allocation4], 1
    %14 = vsyncpa %s13, 0
    loop: start=0, step=1, limit=4
    $region2: #{tpu_custom_call.1} parent=1 // loop_pre_header
      _
    $region3: #{tpu_custom_call.1} parent=1 // loop_header
      %s16 = sphi 0, %s20
      %p17 = scmp.ge.s32.totalorder %s16, 4
      %s23 = sphi 0, %s35
      %s24 = sphi 0, %s31
      %s25 = sphi 0, %s23
      %s26 = sphi 0, %s24
      %s27 = sphi 0, %s25
      %s28 = sphi 0, %s26
      %s38 = sphi 0, %s40
      %s41 = sphi 0, %s38
      %s42 = sphi 0, %s41
      %s58 = sphi 0, %s42
      %s66 = sphi 0, %s68
      %s69 = sphi 0, %s66
      %s70 = sphi 0, %s69
      %s86 = sphi 0, %s70
      %s94 = sphi 0, %s96
      %s97 = sphi 0, %s94
      %s98 = sphi 0, %s97
      %s114 = sphi 0, %s98
      %s122 = sphi 0, %s124
      %s125 = sphi 0, %s122
      %s126 = sphi 0, %s125
      %s142 = sphi 0, %s126
      %s150 = sphi 0, %s152
      %s153 = sphi 0, %s150
      %s154 = sphi 0, %s153
      %s170 = sphi 0, %s154
    $region4: #{tpu_custom_call.1} parent=1 // loop_header_branch
      %19 = sbr.rel (%p17) target = $region8
    $region5: #{tpu_custom_call.1} parent=1 // loop_body
      %s21 = ssub.s32 %s16, 1
      %s22 = ssub.s32 %s16, 2
      %s29 = sadd.s32 1, %s24
      %p30 = scmp.ge.s32.totalorder %s29, 2
      %s31 = scalar_select %p30, 0, %s29
      %s32 = sadd.s32 1, %s23
      %s33 = scalar_select %p30, %s32, %s23
      %p34 = scmp.ge.s32.totalorder %s33, 1
      %s35 = scalar_select %p34, 0, %s33
      %s36 = ssub.s32 %s23, %s35
      %p37 = scmp.eq.s32.totalorder %s36, 0
      %s39 = sadd.s32 %s38, 1
      %s40 = scalar_select %p37, %s38, %s39
      %p43 = pneg %p37
      %p44 = scmp.eq.s32.totalorder %s16, 1
      %p45 = por %p43, %p44
      %p46 = scmp.ne.s32.totalorder %s38, %s41
      %p47 = scmp.eq.s32.totalorder %s16, 0
      %p48 = por %p46, %p47
      %p49 = scmp.ne.s32.totalorder %s38, %s41
      %p50 = scmp.eq.s32.totalorder %s21, 1
      %p51 = por %p49, %p50
      %p52 = scmp.ne.s32.totalorder %s41, %s42
      %p53 = scmp.eq.s32.totalorder %s21, 0
      %p54 = por %p52, %p53
      %p55 = scmp.ne.s32.totalorder %s41, %s42
      %p56 = scmp.eq.s32.totalorder %s22, 1
      %p57 = por %p55, %p56
      %p59 = scmp.ne.s32.totalorder %s42, %s58
      %p60 = scmp.eq.s32.totalorder %s22, 0
      %p61 = por %p59, %p60
      %s62 = ssub.s32 %s24, %s31
      %s63 = ssub.s32 %s23, %s35
      %s64 = sor.u32 %s62, %s63
      %p65 = scmp.eq.s32.totalorder %s64, 0
      %s67 = sadd.s32 %s66, 1
      %s68 = scalar_select %p65, %s66, %s67
      %p71 = pneg %p65
      %p72 = scmp.eq.s32.totalorder %s16, 1
      %p73 = por %p71, %p72
      %p74 = scmp.ne.s32.totalorder %s66, %s69
      %p75 = scmp.eq.s32.totalorder %s16, 0
      %p76 = por %p74, %p75
      %p77 = scmp.ne.s32.totalorder %s66, %s69
      %p78 = scmp.eq.s32.totalorder %s21, 1
      %p79 = por %p77, %p78
      %p80 = scmp.ne.s32.totalorder %s69, %s70
      %p81 = scmp.eq.s32.totalorder %s21, 0
      %p82 = por %p80, %p81
      %p83 = scmp.ne.s32.totalorder %s69, %s70
      %p84 = scmp.eq.s32.totalorder %s22, 1
      %p85 = por %p83, %p84
      %p87 = scmp.ne.s32.totalorder %s70, %s86
      %p88 = scmp.eq.s32.totalorder %s22, 0
      %p89 = por %p87, %p88
      %s90 = ssub.s32 %s24, %s31
      %s91 = ssub.s32 %s23, %s35
      %s92 = sor.u32 %s90, %s91
      %p93 = scmp.eq.s32.totalorder %s92, 0
      %s95 = sadd.s32 %s94, 1
      %s96 = scalar_select %p93, %s94, %s95
      %p99 = pneg %p93
      %p100 = scmp.eq.s32.totalorder %s16, 1
      %p101 = por %p99, %p100
      %p102 = scmp.ne.s32.totalorder %s94, %s97
      %p103 = scmp.eq.s32.totalorder %s16, 0
      %p104 = por %p102, %p103
      %p105 = scmp.ne.s32.totalorder %s94, %s97
      %p106 = scmp.eq.s32.totalorder %s21, 1
      %p107 = por %p105, %p106
      %p108 = scmp.ne.s32.totalorder %s97, %s98
      %p109 = scmp.eq.s32.totalorder %s21, 0
      %p110 = por %p108, %p109
      %p111 = scmp.ne.s32.totalorder %s97, %s98
      %p112 = scmp.eq.s32.totalorder %s22, 1
      %p113 = por %p111, %p112
      %p115 = scmp.ne.s32.totalorder %s98, %s114
      %p116 = scmp.eq.s32.totalorder %s22, 0
      %p117 = por %p115, %p116
      %s118 = ssub.s32 %s24, %s31
      %s119 = ssub.s32 %s23, %s35
      %s120 = sor.u32 %s118, %s119
      %p121 = scmp.eq.s32.totalorder %s120, 0
      %s123 = sadd.s32 %s122, 1
      %s124 = scalar_select %p121, %s122, %s123
      %p127 = pneg %p121
      %p128 = scmp.eq.s32.totalorder %s16, 1
      %p129 = por %p127, %p128
      %p130 = scmp.ne.s32.totalorder %s122, %s125
      %p131 = scmp.eq.s32.totalorder %s16, 0
      %p132 = por %p130, %p131
      %p133 = scmp.ne.s32.totalorder %s122, %s125
      %p134 = scmp.eq.s32.totalorder %s21, 1
      %p135 = por %p133, %p134
      %p136 = scmp.ne.s32.totalorder %s125, %s126
      %p137 = scmp.eq.s32.totalorder %s21, 0
      %p138 = por %p136, %p137
      %p139 = scmp.ne.s32.totalorder %s125, %s126
      %p140 = scmp.eq.s32.totalorder %s22, 1
      %p141 = por %p139, %p140
      %p143 = scmp.ne.s32.totalorder %s126, %s142
      %p144 = scmp.eq.s32.totalorder %s22, 0
      %p145 = por %p143, %p144
      %s146 = ssub.s32 %s24, %s31
      %s147 = ssub.s32 %s23, %s35
      %s148 = sor.u32 %s146, %s147
      %p149 = scmp.eq.s32.totalorder %s148, 0
      %s151 = sadd.s32 %s150, 1
      %s152 = scalar_select %p149, %s150, %s151
      %p155 = pneg %p149
      %p156 = scmp.eq.s32.totalorder %s16, 1
      %p157 = por %p155, %p156
      %p158 = scmp.ne.s32.totalorder %s150, %s153
      %p159 = scmp.eq.s32.totalorder %s16, 0
      %p160 = por %p158, %p159
      %p161 = scmp.ne.s32.totalorder %s150, %s153
      %p162 = scmp.eq.s32.totalorder %s21, 1
      %p163 = por %p161, %p162
      %p164 = scmp.ne.s32.totalorder %s153, %s154
      %p165 = scmp.eq.s32.totalorder %s21, 0
      %p166 = por %p164, %p165
      %p167 = scmp.ne.s32.totalorder %s153, %s154
      %p168 = scmp.eq.s32.totalorder %s22, 1
      %p169 = por %p167, %p168
      %p171 = scmp.ne.s32.totalorder %s154, %s170
      %p172 = scmp.eq.s32.totalorder %s22, 0
      %p173 = por %p171, %p172
      %p174 = scmp.le.s32.totalorder 1, %s16
      %p175 = scmp.lt.s32.totalorder %s16, 3
      %p176 = pnand %p174, %p175
      %p177 = pneg %p176
      // Predicated region
      $region9: #{tpu_custom_call.1} parent=5 // pred_check
        _
      $region10: #{tpu_custom_call.1} parent=5 // pred_check_branch
        %179 = sbr.rel (%p176) target = $region12
      $region11: #{tpu_custom_call.1} parent=5 // pred_region
        %s180 = ssub.s32 %s16, 1
        // Predicated region
        $region13: #{tpu_custom_call.1} parent=11 // pred_check
          %p181 = pneg %p54
        $region14: #{tpu_custom_call.1} parent=11 // pred_check_branch
          %183 = sbr.rel (%p181) target = $region16
        $region15: #{tpu_custom_call.1} parent=11 // pred_region
          %p184 = scmp.lt.s32.totalorder %s25, 0
          %s185 = scalar_select %p184, %s25, 0
          %s186 = smul.addr %s185, 8
          %s187 = scalar_lea.vmem %s0, %s186
        $region16: #{tpu_custom_call.1} parent=11 // pred_fallthru
          _
      $region12: #{tpu_custom_call.1} parent=5 // pred_fallthru
        _
      %p188 = scmp.lt.s32.totalorder %s16, 2
      // Predicated region
      $region17: #{tpu_custom_call.1} parent=5 // pred_check
        %p189 = pneg %p188
      $region18: #{tpu_custom_call.1} parent=5 // pred_check_branch
        %191 = sbr.rel (%p189) target = $region20
      $region19: #{tpu_custom_call.1} parent=5 // pred_region
        // Predicated region
        $region21: #{tpu_custom_call.1} parent=19 // pred_check
          %p192 = pneg %p76
        $region22: #{tpu_custom_call.1} parent=19 // pred_check_branch
          %194 = sbr.rel (%p192) target = $region24
        $region23: #{tpu_custom_call.1} parent=19 // pred_region
          %p195 = scmp.lt.s32.totalorder %s24, 1
          %s196 = scalar_select %p195, %s24, 1
          %p197 = scmp.lt.s32.totalorder %s23, 0
          %s198 = scalar_select %p197, %s23, 0
          %s199 = sadd.s32 %s198, %s196
          %s200 = smul.addr %s199, 8
          %s201 = scalar_lea.vmem %s1, %s200
        $region24: #{tpu_custom_call.1} parent=19 // pred_fallthru
          _
        // Predicated region
        $region25: #{tpu_custom_call.1} parent=19 // pred_check
          %p202 = pneg %p104
        $region26: #{tpu_custom_call.1} parent=19 // pred_check_branch
          %204 = sbr.rel (%p202) target = $region28
        $region27: #{tpu_custom_call.1} parent=19 // pred_region
          %p205 = scmp.lt.s32.totalorder %s24, 1
          %s206 = scalar_select %p205, %s24, 1
          %p207 = scmp.lt.s32.totalorder %s23, 0
          %s208 = scalar_select %p207, %s23, 0
          %s209 = sadd.s32 %s208, %s206
          %s210 = smul.addr %s209, 8
          %s211 = scalar_lea.vmem %s2, %s210
        $region28: #{tpu_custom_call.1} parent=19 // pred_fallthru
          _
        // Predicated region
        $region29: #{tpu_custom_call.1} parent=19 // pred_check
          %p212 = pneg %p132
        $region30: #{tpu_custom_call.1} parent=19 // pred_check_branch
          %214 = sbr.rel (%p212) target = $region32
        $region31: #{tpu_custom_call.1} parent=19 // pred_region
          %s215 = sand.u32 %s122, 1
          %s216 = scalar_lea.sflag [#allocation3], %s215
          %s217 = sand.u32 %s122, 1
          %s218 = smul.addr %s217, 8
          %s219 = scalar_lea.vmem [#allocation2], %s218
          %s221 = ssub.s32 128, 128
          %222 = vsyncadd %s216, %s221
          %s223 = sadd.s32 %s23, %s24
          %s224 = smul.addr %s223, 128
          %s225 = scalar_lea.hbm %s3, %s224
          %s227 = sshll.u32 %s219, 4
          %s228 = int_to_ptr.vmem [resolvable:$true] %s227
          %230 = dma.hbm_to_vmem [thread:$0]  %s225, 128, %s228, %s216
        $region32: #{tpu_custom_call.1} parent=19 // pred_fallthru
          _
      $region20: #{tpu_custom_call.1} parent=5 // pred_fallthru
        _
      %p231 = scmp.le.s32.totalorder 1, %s16
      %p232 = scmp.lt.s32.totalorder %s16, 3
      %p233 = pnand %p231, %p232
      %p234 = pneg %p233
      // Predicated region
      $region33: #{tpu_custom_call.1} parent=5 // pred_check
        _
      $region34: #{tpu_custom_call.1} parent=5 // pred_check_branch
        %236 = sbr.rel (%p233) target = $region36
      $region35: #{tpu_custom_call.1} parent=5 // pred_region
        %s237 = ssub.s32 %s16, 1
        %s238 = sand.u32 %s125, 1
        %s239 = scalar_lea.sflag [#allocation3], %s238
        %s240 = sand.u32 %s125, 1
        %s241 = smul.addr %s240, 8
        %s242 = scalar_lea.vmem [#allocation2], %s241
        // Predicated region
        $region37: #{tpu_custom_call.1} parent=35 // pred_check
          %p243 = pneg %p138
        $region38: #{tpu_custom_call.1} parent=35 // pred_check_branch
          %245 = sbr.rel (%p243) target = $region40
        $region39: #{tpu_custom_call.1} parent=35 // pred_region
          %246 = dma.done %s239, 128
        $region40: #{tpu_custom_call.1} parent=35 // pred_fallthru
          _
        %p247 = scmp.lt.s32.totalorder %s25, 0
        %s248 = scalar_select %p247, %s25, 0
        %s249 = smul.addr %s248, 8
        %s250 = scalar_lea.vmem %s0, %s249
        %p251 = pneg %p54
        %p252 = pneg %p51
        %p253 = scmp.lt.s32.totalorder %s26, 1
        %s254 = scalar_select %p253, %s26, 1
        %p255 = scmp.lt.s32.totalorder %s25, 0
        %s256 = scalar_select %p255, %s25, 0
        %s257 = sadd.s32 %s256, %s254
        %s258 = smul.addr %s257, 8
        %s259 = scalar_lea.vmem %s1, %s258
        %p260 = pneg %p82
        %p261 = pneg %p79
        %p262 = scmp.lt.s32.totalorder %s26, 1
        %s263 = scalar_select %p262, %s26, 1
        %p264 = scmp.lt.s32.totalorder %s25, 0
        %s265 = scalar_select %p264, %s25, 0
        %s266 = sadd.s32 %s265, %s263
        %s267 = smul.addr %s266, 8
        %s268 = scalar_lea.vmem %s2, %s267
        %p269 = pneg %p110
        %p270 = pneg %p107
        %s271 = sand.u32 %s125, 1
        %s272 = scalar_lea.sflag [#allocation3], %s271
        %s273 = sand.u32 %s125, 1
        %s274 = smul.addr %s273, 8
        %s275 = scalar_lea.vmem [#allocation2], %s274
        %p276 = pneg %p138
        %p277 = pneg %p135
        %p278 = pneg %p166
        %p279 = pneg %p163
        %s280 = sand.u32 %s153, 1
        %s281 = scalar_lea.sflag [#allocation4], %s280
        %s282 = sand.u32 %s153, 1
        %s283 = smul.addr %s282, 8
        %s284 = scalar_lea.vmem [#allocation5], %s283
        %p285 = scmp.lt.s32.totalorder %s25, 0
        %s286 = scalar_select %p285, %s25, 0
        %s287 = smul.addr %s286, 8
        %s288 = scalar_lea.vmem %s0, %s287
        %p289 = scmp.lt.s32.totalorder %s26, 1
        %s290 = scalar_select %p289, %s26, 1
        %p291 = scmp.lt.s32.totalorder %s25, 0
        %s292 = scalar_select %p291, %s25, 0
        %s293 = sadd.s32 %s292, %s290
        %s294 = smul.addr %s293, 8
        %s295 = scalar_lea.vmem %s1, %s294
        %p296 = scmp.lt.s32.totalorder %s26, 1
        %s297 = scalar_select %p296, %s26, 1
        %p298 = scmp.lt.s32.totalorder %s25, 0
        %s299 = scalar_select %p298, %s25, 0
        %s300 = sadd.s32 %s299, %s297
        %s301 = smul.addr %s300, 8
        %s302 = scalar_lea.vmem %s2, %s301
        %v303 = vld [vmem:[%s295] sm:$0xff]
        %v304 = vld [vmem:[%s288] sm:$0xff]
        %306 = vset.pattern.permute.xlu0 0
        %307 = vperm.xlu0 %306, %v304
        %v308 = vpop.permute.xlu0 %307
        %v310 = vmul.f32 %v303, %v308
        %v311 = vld [vmem:[%s302] sm:$0xff]
        %s312 = scalar_lea.vmem %s288, 8
        %v313 = vld [vmem:[%s312] sm:$0xff]
        %315 = vset.pattern.permute.xlu0 0
        %316 = vperm.xlu0 %315, %v313
        %v317 = vpop.permute.xlu0 %316
        %v319 = vmul.f32 %v311, %v317
        %v320 = vadd.f32 %v310, %v319
        %v321 = vld [vmem:[%s242] sm:$0xff]
        %s322 = scalar_lea.vmem %s288, 16
        %v323 = vld [vmem:[%s322] sm:$0xff]
        %325 = vset.pattern.permute.xlu0 0
        %326 = vperm.xlu0 %325, %v323
        %v327 = vpop.permute.xlu0 %326
        %v329 = vmul.f32 %v321, %v327
        %v330 = vadd.f32 %v320, %v329
        %vm331 = vcmask 261120
        %332 = vst.msk [vmem:[%s284] sm:$0xff] %vm331, %v330
        %s333 = sand.u32 %s153, 1
        %s334 = scalar_lea.sflag [#allocation4], %s333
        %s335 = sand.u32 %s153, 1
        %s336 = smul.addr %s335, 8
        %s337 = scalar_lea.vmem [#allocation5], %s336
        // Predicated region
        $region41: #{tpu_custom_call.1} parent=35 // pred_check
          %p338 = pneg %p163
        $region42: #{tpu_custom_call.1} parent=35 // pred_check_branch
          %340 = sbr.rel (%p338) target = $region44
        $region43: #{tpu_custom_call.1} parent=35 // pred_region
          %s342 = ssub.s32 128, 128
          %343 = vsyncadd %s334, %s342
          %s344 = sadd.s32 %s25, %s26
          %s345 = smul.addr %s344, 128
          %s346 = scalar_lea.hbm %s4, %s345
          %s348 = sshll.u32 %s337, 4
          %s349 = int_to_ptr.vmem [resolvable:$true] %s348
          %351 = dma.vmem_to_hbm [thread:$0]  %s349, 128, %s346, %s334
        $region44: #{tpu_custom_call.1} parent=35 // pred_fallthru
          _
      $region36: #{tpu_custom_call.1} parent=5 // pred_fallthru
        _
      %p352 = scmp.le.s32.totalorder 2, %s16
      // Predicated region
      $region45: #{tpu_custom_call.1} parent=5 // pred_check
        %p353 = pneg %p352
      $region46: #{tpu_custom_call.1} parent=5 // pred_check_branch
        %355 = sbr.rel (%p353) target = $region48
      $region47: #{tpu_custom_call.1} parent=5 // pred_region
        %s356 = ssub.s32 %s16, 2
        // Predicated region
        $region49: #{tpu_custom_call.1} parent=47 // pred_check
          %p357 = pneg %p169
        $region50: #{tpu_custom_call.1} parent=47 // pred_check_branch
          %359 = sbr.rel (%p357) target = $region52
        $region51: #{tpu_custom_call.1} parent=47 // pred_region
          %s360 = sand.u32 %s154, 1
          %s361 = scalar_lea.sflag [#allocation4], %s360
          %s362 = sand.u32 %s154, 1
          %s363 = smul.addr %s362, 8
          %s364 = scalar_lea.vmem [#allocation5], %s363
          %365 = dma.done %s361, 128
        $region52: #{tpu_custom_call.1} parent=47 // pred_fallthru
          _
      $region48: #{tpu_custom_call.1} parent=5 // pred_fallthru
        _
    $region6: #{tpu_custom_call.1} parent=1 // loop_footer
      %s20 = sadd.s32 1, %s16
    $region7: #{tpu_custom_call.1} parent=1 // loop_footer_branch
      %15 = sbr.rel target = $region3
    $region8: #{tpu_custom_call.1} parent=1 // loop_exit
      _
    %366 = vsyncpa [#allocation3], 1
    %s367 = scalar_lea.sflag [#allocation3], 1
    %368 = vsyncpa %s367, 1
    %369 = vsyncpa [#allocation4], 1
    %s370 = scalar_lea.sflag [#allocation4], 1
    %371 = vsyncpa %s370, 1

</llo_original>
